<compile_context>
chip_gen: v5e
topology: v5e:2x2
jax: 0.10.0
libtpu: 0.0.40
codegen_flags: <defaults>
</compile_context>

<pallas_src>
import jax
import jax.numpy as jnp
from jax import lax
from jax.experimental import pallas as pl
from jax.experimental.pallas import tpu as pltpu


def _gqa_kernel(q_ref, k_ref, wq_ref, bq_ref, wkv_ref, bkv_ref, wo_ref, bo_ref,
                out_ref):
    g = pl.program_id(2)

    Qb = q_ref[0]        # (tq, D)     bf16
    Kb = k_ref[0]        # (S, D)      bf16
    Wq_g = wq_ref[0]     # (D, d_k)    bf16  (pre-transposed, 1/sqrt(d_k) folded)
    bq_g = bq_ref[0]     # (1, d_k)    f32   (1/sqrt(d_k) folded)
    Wkv_g = wkv_ref[0]   # (D, 2*d_k)  bf16  (pre-transposed)
    bkv_g = bkv_ref[0]   # (1, 2*d_k)  f32
    Wo_g = wo_ref[0]     # (d_k, D)    bf16  (oriented for ctx @ Wo_g)
    bo = bo_ref[...]     # (1, D)      f32

    d_k = Wq_g.shape[1]

    # --- projections (MXU, bf16 operands, f32 accumulation) ---
    q_g = jnp.dot(Qb, Wq_g, preferred_element_type=jnp.float32) + bq_g     # (tq, d_k)
    kv = jnp.dot(Kb, Wkv_g, preferred_element_type=jnp.float32) + bkv_g    # (S, 2*d_k)
    k = kv[:, :d_k]
    v = kv[:, d_k:]

    # --- attention scores (scale already folded into Wq/bq); contract last
    #     dims directly so no transposed copy of k is materialized ---
    scores = lax.dot_general(
        q_g.astype(jnp.bfloat16), k.astype(jnp.bfloat16),
        dimension_numbers=(((1,), (1,)), ((), ())),
        preferred_element_type=jnp.float32)                                # (tq, S)

    m = jnp.max(scores, axis=-1, keepdims=True)
    expd = jnp.exp(scores - m)                                             # f32
    rowsum = jnp.sum(expd, axis=-1, keepdims=True)                         # (tq, 1)

    # Unnormalized context first; normalize the small (tq, d_k) result with a
    # cheap EUP reciprocal instead of dividing the (tq, S) matrix.
    ctx_un = jnp.dot(expd.astype(jnp.bfloat16), v.astype(jnp.bfloat16),
                     preferred_element_type=jnp.float32)                   # (tq, d_k)
    ctx = ctx_un * pl.reciprocal(rowsum, approx=True)

    # --- this group's contribution to the output projection ---
    contrib = jnp.dot(ctx.astype(jnp.bfloat16), Wo_g,
                      preferred_element_type=jnp.float32)                  # (tq, D)

    @pl.when(g == 0)
    def _():
        out_ref[0] = jnp.broadcast_to(bo, contrib.shape)

    out_ref[0] = out_ref[0] + contrib


def _pick_q_tile(seq_len):
    """Largest convenient query tile that divides seq_len (full seq otherwise)."""
    for t in (256, 128):
        if seq_len > t and seq_len % t == 0:
            return t
    return seq_len


def gqa_forward(Q, K, V, params):
    """Pallas GQA forward.  V is ignored (matches the PyTorch module)."""
    del V
    B, S, D = Q.shape
    wq, bq, wkv, bkv, wo, bo = (params["wq"], params["bq"], params["wkv"],
                                params["bkv"], params["wo"], params["bo"])
    G, _, d_k = wq.shape

    tq = _pick_q_tile(S)
    nq = S // tq

    Qb = Q.astype(jnp.bfloat16)
    Kb = K.astype(jnp.bfloat16)

    grid_spec = pltpu.PrefetchScalarGridSpec(
        num_scalar_prefetch=0,
        grid=(B, nq, G),
        in_specs=[
            pl.BlockSpec((1, tq, D), lambda b, qi, g: (b, qi, 0)),         # Q
            pl.BlockSpec((1, S, D), lambda b, qi, g: (b, 0, 0)),           # K
            pl.BlockSpec((1, D, d_k), lambda b, qi, g: (g, 0, 0)),         # Wq
            pl.BlockSpec((1, 1, d_k), lambda b, qi, g: (g, 0, 0)),         # bq
            pl.BlockSpec((1, D, 2 * d_k), lambda b, qi, g: (g, 0, 0)),     # Wkv
            pl.BlockSpec((1, 1, 2 * d_k), lambda b, qi, g: (g, 0, 0)),     # bkv
            pl.BlockSpec((1, d_k, D), lambda b, qi, g: (g, 0, 0)),         # Wo
            pl.BlockSpec((1, D), lambda b, qi, g: (0, 0)),                 # bo
        ],
        out_specs=pl.BlockSpec((1, tq, D), lambda b, qi, g: (b, qi, 0)),
    )

    return pl.pallas_call(
        _gqa_kernel,
        out_shape=jax.ShapeDtypeStruct((B, S, D), jnp.float32),
        grid_spec=grid_spec,
        compiler_params=pltpu.CompilerParams(
            dimension_semantics=("parallel", "parallel", "arbitrary"),
            vmem_limit_bytes=48 * 1024 * 1024),
    )(Qb, Kb, wq, bq, wkv, bkv, wo, bo)


def gqa_reference(Q, K, V, full):
    """Pure-JAX (f32) mirror of the PyTorch forward, for verification."""
    del V
    B, S, D = Q.shape
    Wq, bq, Wkv_list, bkv_list, Wo, bo = (full["Wq"], full["bq"], full["Wkv"],
                                          full["bkv"], full["Wo"], full["bo"])
    G = len(Wkv_list)
    d_k = D // G
    q = (Q @ Wq.T + bq).reshape(B, S, G, d_k).transpose(0, 2, 1, 3)
    outs = []
    for g in range(G):
        kv = (K @ Wkv_list[g].T + bkv_list[g]).reshape(B, S, 2, d_k)
        k = kv[:, :, 0]
        v = kv[:, :, 1]
        qg = q[:, g]
        sc = jnp.einsum("bqd,bkd->bqk", qg, k) / jnp.sqrt(jnp.float32(d_k))
        w = jax.nn.softmax(sc, axis=-1)
        outs.append(jnp.einsum("bqk,bkd->bqd", w, v))
    comb = jnp.concatenate(outs, axis=-1)
    return comb @ Wo.T + bo


def make_params(key, d_model, num_groups):
    """Deterministic synthetic parameters (PyTorch Linear layout: (out, in))."""
    d_k = d_model // num_groups
    ks = jax.random.split(key, 6)
    Wq = jax.random.normal(ks[0], (d_model, d_model), jnp.float32) * 0.05
    bq = jax.random.normal(ks[1], (d_model,), jnp.float32) * 0.05
    Wkv = jax.random.normal(ks[2], (num_groups, 2 * d_k, d_model),
                            jnp.float32) * 0.05
    bkv = jax.random.normal(ks[3], (num_groups, 2 * d_k), jnp.float32) * 0.05
    Wo = jax.random.normal(ks[4], (d_model, d_model), jnp.float32) * 0.05
    bo = jax.random.normal(ks[5], (d_model,), jnp.float32) * 0.05

    scale = 1.0 / jnp.sqrt(jnp.float32(d_k))

    # Kernel-side layouts (pre-transposed, bf16 MXU operands, f32 biases):
    #  - wq:  (G, D, d_k)   with 1/sqrt(d_k) folded in
    #  - wkv: (G, D, 2*d_k)
    #  - wo:  (G, d_k, D)   rows of Wo^T for group g, so contribution = ctx @ wo[g]
    params = {
        "wq": (Wq * scale).reshape(num_groups, d_k, d_model)
                          .transpose(0, 2, 1).astype(jnp.bfloat16),
        "bq": (bq * scale).reshape(num_groups, 1, d_k),
        "wkv": Wkv.transpose(0, 2, 1).astype(jnp.bfloat16),
        "bkv": bkv.reshape(num_groups, 1, 2 * d_k),
        "wo": Wo.T.reshape(num_groups, d_k, d_model).astype(jnp.bfloat16),
        "bo": bo.reshape(1, d_model),
    }
    # Full PyTorch-layout copies for the f32 reference implementation.
    full = {
        "Wq": Wq, "bq": bq,
        "Wkv": [Wkv[g] for g in range(num_groups)],
        "bkv": [bkv[g] for g in range(num_groups)],
        "Wo": Wo, "bo": bo,
    }
    return params, full


if __name__ == "__main__":
    d_model, num_groups = 32, 4
    batch, seq = 2, 8

    key = jax.random.PRNGKey(0)
    k_p, k_q, k_k, k_v = jax.random.split(key, 4)
    params, full = make_params(k_p, d_model, num_groups)

    Q = jax.random.normal(k_q, (batch, seq, d_model), jnp.float32)
    K = jax.random.normal(k_k, (batch, seq, d_model), jnp.float32)
    V = jax.random.normal(k_v, (batch, seq, d_model), jnp.float32)  # ignored

    out = gqa_forward(Q, K, V, params)
    out = jax.block_until_ready(out)

    ref = gqa_reference(Q, K, V, full)
    assert out.shape == (batch, seq, d_model)
    max_err = float(jnp.max(jnp.abs(out - ref)))
    # bf16 MXU operands + approx reciprocal => looser tolerance than pure f32.
    assert max_err < 2e-2, max_err

    print("KERNEL_OK")
</pallas_src>

<mosaic_0001>
module attributes {stable_mosaic.version = 11 : i64} {
  func.func @_gqa_kernel(%arg0: i32, %arg1: i32, %arg2: i32, %arg3: memref<1x8x32xbf16, #tpu.memory_space<vmem>>, %arg4: memref<1x8x32xbf16, #tpu.memory_space<vmem>>, %arg5: memref<1x32x8xbf16, #tpu.memory_space<vmem>>, %arg6: memref<1x1x8xf32, #tpu.memory_space<vmem>>, %arg7: memref<1x32x16xbf16, #tpu.memory_space<vmem>>, %arg8: memref<1x1x16xf32, #tpu.memory_space<vmem>>, %arg9: memref<1x8x32xbf16, #tpu.memory_space<vmem>>, %arg10: memref<1x32xf32, #tpu.memory_space<vmem>>, %arg11: memref<1x8x32xf32, #tpu.memory_space<vmem>>) attributes {dimension_semantics = [#tpu.dimension_semantics<parallel>, #tpu.dimension_semantics<parallel>, #tpu.dimension_semantics<arbitrary>], iteration_bounds = array<i64: 2, 1, 4>, scalar_prefetch = 0 : i64, scratch_operands = 0 : i64, tpu.core_type = #tpu.core_type<tc>, window_params = [{transform_indices = @transform_0, window_bounds = array<i64: 1, 8, 32>}, {transform_indices = @transform_1, window_bounds = array<i64: 1, 8, 32>}, {transform_indices = @transform_2, window_bounds = array<i64: 1, 32, 8>}, {transform_indices = @transform_3, window_bounds = array<i64: 1, 1, 8>}, {transform_indices = @transform_4, window_bounds = array<i64: 1, 32, 16>}, {transform_indices = @transform_5, window_bounds = array<i64: 1, 1, 16>}, {transform_indices = @transform_6, window_bounds = array<i64: 1, 8, 32>}, {pipeline_mode = #tpu.pipeline_mode<synchronous>, transform_indices = @transform_7, window_bounds = array<i64: 1, 32>}, {transform_indices = @transform_8, window_bounds = array<i64: 1, 8, 32>}]} {
    %c0 = arith.constant 0 : index
    %c0_0 = arith.constant 0 : index
    %c0_1 = arith.constant 0 : index
    %0 = vector.load %arg3[%c0, %c0_0, %c0_1] : memref<1x8x32xbf16, #tpu.memory_space<vmem>>, vector<1x8x32xbf16>
    %1 = vector.shape_cast %0 : vector<1x8x32xbf16> to vector<8x32xbf16>
    %c0_2 = arith.constant 0 : index
    %c0_3 = arith.constant 0 : index
    %c0_4 = arith.constant 0 : index
    %2 = vector.load %arg4[%c0_2, %c0_3, %c0_4] : memref<1x8x32xbf16, #tpu.memory_space<vmem>>, vector<1x8x32xbf16>
    %3 = vector.shape_cast %2 : vector<1x8x32xbf16> to vector<8x32xbf16>
    %c0_5 = arith.constant 0 : index
    %c0_6 = arith.constant 0 : index
    %c0_7 = arith.constant 0 : index
    %4 = vector.load %arg5[%c0_5, %c0_6, %c0_7] : memref<1x32x8xbf16, #tpu.memory_space<vmem>>, vector<1x32x8xbf16>
    %5 = vector.shape_cast %4 : vector<1x32x8xbf16> to vector<32x8xbf16>
    %c0_8 = arith.constant 0 : index
    %c0_9 = arith.constant 0 : index
    %c0_10 = arith.constant 0 : index
    %6 = vector.load %arg6[%c0_8, %c0_9, %c0_10] : memref<1x1x8xf32, #tpu.memory_space<vmem>>, vector<1x1x8xf32>
    %7 = vector.shape_cast %6 : vector<1x1x8xf32> to vector<1x8xf32>
    %c0_11 = arith.constant 0 : index
    %c0_12 = arith.constant 0 : index
    %c0_13 = arith.constant 0 : index
    %8 = vector.load %arg7[%c0_11, %c0_12, %c0_13] : memref<1x32x16xbf16, #tpu.memory_space<vmem>>, vector<1x32x16xbf16>
    %9 = vector.shape_cast %8 : vector<1x32x16xbf16> to vector<32x16xbf16>
    %c0_14 = arith.constant 0 : index
    %c0_15 = arith.constant 0 : index
    %c0_16 = arith.constant 0 : index
    %10 = vector.load %arg8[%c0_14, %c0_15, %c0_16] : memref<1x1x16xf32, #tpu.memory_space<vmem>>, vector<1x1x16xf32>
    %11 = vector.shape_cast %10 : vector<1x1x16xf32> to vector<1x16xf32>
    %c0_17 = arith.constant 0 : index
    %c0_18 = arith.constant 0 : index
    %c0_19 = arith.constant 0 : index
    %12 = vector.load %arg9[%c0_17, %c0_18, %c0_19] : memref<1x8x32xbf16, #tpu.memory_space<vmem>>, vector<1x8x32xbf16>
    %13 = vector.shape_cast %12 : vector<1x8x32xbf16> to vector<8x32xbf16>
    %c0_20 = arith.constant 0 : index
    %c0_21 = arith.constant 0 : index
    %14 = vector.load %arg10[%c0_20, %c0_21] : memref<1x32xf32, #tpu.memory_space<vmem>>, vector<1x32xf32>
    %cst = arith.constant dense<0.000000e+00> : vector<8x8xf32>
    %15 = tpu.matmul %1, %5, %cst {dimension_numbers = #tpu.dot_dimension_numbers<[1], [0], [0], [1], [0, 0, 1, 1], [], []>} : vector<8x32xbf16>, vector<32x8xbf16>, vector<8x8xf32> -> vector<8x8xf32>
    %16 = vector.broadcast %7 : vector<1x8xf32> to vector<8x8xf32>
    %17 = arith.addf %15, %16 : vector<8x8xf32>
    %cst_22 = arith.constant dense<0.000000e+00> : vector<8x16xf32>
    %18 = tpu.matmul %3, %9, %cst_22 {dimension_numbers = #tpu.dot_dimension_numbers<[1], [0], [0], [1], [0, 0, 1, 1], [], []>} : vector<8x32xbf16>, vector<32x16xbf16>, vector<8x16xf32> -> vector<8x16xf32>
    %19 = vector.broadcast %11 : vector<1x16xf32> to vector<8x16xf32>
    %20 = arith.addf %18, %19 : vector<8x16xf32>
    %21 = vector.extract_strided_slice %20 {offsets = [0, 0], sizes = [8, 8], strides = [1, 1]} : vector<8x16xf32> to vector<8x8xf32>
    %22 = vector.extract_strided_slice %20 {offsets = [0, 8], sizes = [8, 8], strides = [1, 1]} : vector<8x16xf32> to vector<8x8xf32>
    %23 = arith.truncf %17 : vector<8x8xf32> to vector<8x8xbf16>
    %24 = arith.truncf %21 : vector<8x8xf32> to vector<8x8xbf16>
    %cst_23 = arith.constant dense<0.000000e+00> : vector<8x8xf32>
    %25 = tpu.matmul %23, %24, %cst_23 {dimension_numbers = #tpu.dot_dimension_numbers<[1], [1], [0], [0], [0, 0, 1, 0], [], []>} : vector<8x8xbf16>, vector<8x8xbf16>, vector<8x8xf32> -> vector<8x8xf32>
    %cst_24 = arith.constant dense<0xFF800000> : vector<8xf32>
    %26 = vector.multi_reduction <maximumf>, %25, %cst_24 [1] : vector<8x8xf32> to vector<8xf32>
    %27 = vector.shape_cast %26 : vector<8xf32> to vector<8x1xf32>
    %28 = vector.broadcast %27 : vector<8x1xf32> to vector<8x8xf32>
    %29 = arith.subf %25, %28 : vector<8x8xf32>
    %30 = math.exp %29 : vector<8x8xf32>
    %cst_25 = arith.constant dense<0.000000e+00> : vector<8xf32>
    %31 = vector.multi_reduction <add>, %30, %cst_25 [1] : vector<8x8xf32> to vector<8xf32>
    %32 = vector.shape_cast %31 : vector<8xf32> to vector<8x1xf32>
    %33 = arith.truncf %30 : vector<8x8xf32> to vector<8x8xbf16>
    %34 = arith.truncf %22 : vector<8x8xf32> to vector<8x8xbf16>
    %cst_26 = arith.constant dense<0.000000e+00> : vector<8x8xf32>
    %35 = tpu.matmul %33, %34, %cst_26 {dimension_numbers = #tpu.dot_dimension_numbers<[1], [0], [0], [1], [0, 0, 1, 1], [], []>} : vector<8x8xbf16>, vector<8x8xbf16>, vector<8x8xf32> -> vector<8x8xf32>
    %36 = tpu.reciprocal %32 {approx = true} : vector<8x1xf32> -> vector<8x1xf32>
    %37 = vector.broadcast %36 : vector<8x1xf32> to vector<8x8xf32>
    %38 = arith.mulf %35, %37 : vector<8x8xf32>
    %39 = arith.truncf %38 : vector<8x8xf32> to vector<8x8xbf16>
    %cst_27 = arith.constant dense<0.000000e+00> : vector<8x32xf32>
    %40 = tpu.matmul %39, %13, %cst_27 {dimension_numbers = #tpu.dot_dimension_numbers<[1], [0], [0], [1], [0, 0, 1, 1], [], []>} : vector<8x8xbf16>, vector<8x32xbf16>, vector<8x32xf32> -> vector<8x32xf32>
    %c0_i32 = arith.constant 0 : i32
    %41 = arith.cmpi eq, %arg2, %c0_i32 : i32
    %42 = arith.extui %41 : i1 to i32
    %c0_i32_28 = arith.constant 0 : i32
    %43 = arith.cmpi ne, %42, %c0_i32_28 : i32
    scf.if %43 {
      %50 = vector.shape_cast %14 : vector<1x32xf32> to vector<1x32xf32>
      %51 = vector.broadcast %50 : vector<1x32xf32> to vector<8x32xf32>
      %c0_35 = arith.constant 0 : index
      %c0_36 = arith.constant 0 : index
      %c0_37 = arith.constant 0 : index
      %52 = vector.load %arg11[%c0_35, %c0_36, %c0_37] : memref<1x8x32xf32, #tpu.memory_space<vmem>>, vector<1x8x32xf32>
      %53 = vector.shape_cast %52 : vector<1x8x32xf32> to vector<8x32xf32>
      %54 = vector.shape_cast %51 : vector<8x32xf32> to vector<1x8x32xf32>
      tpu.vector_store %arg11[%c0_35, %c0_36, %c0_37], %54 {strides = array<i32>} : memref<1x8x32xf32, #tpu.memory_space<vmem>>, vector<1x8x32xf32>,
    } else {
    }
    %c0_29 = arith.constant 0 : index
    %c0_30 = arith.constant 0 : index
    %c0_31 = arith.constant 0 : index
    %44 = vector.load %arg11[%c0_29, %c0_30, %c0_31] : memref<1x8x32xf32, #tpu.memory_space<vmem>>, vector<1x8x32xf32>
    %45 = vector.shape_cast %44 : vector<1x8x32xf32> to vector<8x32xf32>
    %46 = arith.addf %45, %40 : vector<8x32xf32>
    %c0_32 = arith.constant 0 : index
    %c0_33 = arith.constant 0 : index
    %c0_34 = arith.constant 0 : index
    %47 = vector.load %arg11[%c0_32, %c0_33, %c0_34] : memref<1x8x32xf32, #tpu.memory_space<vmem>>, vector<1x8x32xf32>
    %48 = vector.shape_cast %47 : vector<1x8x32xf32> to vector<8x32xf32>
    %49 = vector.shape_cast %46 : vector<8x32xf32> to vector<1x8x32xf32>
    tpu.vector_store %arg11[%c0_32, %c0_33, %c0_34], %49 {strides = array<i32>} : memref<1x8x32xf32, #tpu.memory_space<vmem>>, vector<1x8x32xf32>,
    return
  }
  func.func @transform_0(%arg0: i32, %arg1: i32, %arg2: i32) -> (i32, i32, i32) {
    %c0_i32 = arith.constant 0 : i32
    %c0_i32_0 = arith.constant 0 : i32
    return %arg0, %arg1, %c0_i32 : i32, i32, i32
  }
  func.func @transform_1(%arg0: i32, %arg1: i32, %arg2: i32) -> (i32, i32, i32) {
    %c0_i32 = arith.constant 0 : i32
    %c0_i32_0 = arith.constant 0 : i32
    %c0_i32_1 = arith.constant 0 : i32
    return %arg0, %c0_i32, %c0_i32_0 : i32, i32, i32
  }
  func.func @transform_2(%arg0: i32, %arg1: i32, %arg2: i32) -> (i32, i32, i32) {
    %c0_i32 = arith.constant 0 : i32
    %c0_i32_0 = arith.constant 0 : i32
    %c0_i32_1 = arith.constant 0 : i32
    return %arg2, %c0_i32, %c0_i32_0 : i32, i32, i32
  }
  func.func @transform_3(%arg0: i32, %arg1: i32, %arg2: i32) -> (i32, i32, i32) {
    %c0_i32 = arith.constant 0 : i32
    %c0_i32_0 = arith.constant 0 : i32
    %c0_i32_1 = arith.constant 0 : i32
    return %arg2, %c0_i32, %c0_i32_0 : i32, i32, i32
  }
  func.func @transform_4(%arg0: i32, %arg1: i32, %arg2: i32) -> (i32, i32, i32) {
    %c0_i32 = arith.constant 0 : i32
    %c0_i32_0 = arith.constant 0 : i32
    %c0_i32_1 = arith.constant 0 : i32
    return %arg2, %c0_i32, %c0_i32_0 : i32, i32, i32
  }
  func.func @transform_5(%arg0: i32, %arg1: i32, %arg2: i32) -> (i32, i32, i32) {
    %c0_i32 = arith.constant 0 : i32
    %c0_i32_0 = arith.constant 0 : i32
    %c0_i32_1 = arith.constant 0 : i32
    return %arg2, %c0_i32, %c0_i32_0 : i32, i32, i32
  }
  func.func @transform_6(%arg0: i32, %arg1: i32, %arg2: i32) -> (i32, i32, i32) {
    %c0_i32 = arith.constant 0 : i32
    %c0_i32_0 = arith.constant 0 : i32
    %c0_i32_1 = arith.constant 0 : i32
    return %arg2, %c0_i32, %c0_i32_0 : i32, i32, i32
  }
  func.func @transform_7(%arg0: i32, %arg1: i32, %arg2: i32) -> (i32, i32) {
    %c0_i32 = arith.constant 0 : i32
    %c0_i32_0 = arith.constant 0 : i32
    %c0_i32_1 = arith.constant 0 : i32
    return %c0_i32, %c0_i32_0 : i32, i32
  }
  func.func @transform_8(%arg0: i32, %arg1: i32, %arg2: i32) -> (i32, i32, i32) {
    %c0_i32 = arith.constant 0 : i32
    %c0_i32_0 = arith.constant 0 : i32
    return %arg0, %arg1, %c0_i32 : i32, i32, i32
  }
}

</mosaic_0001>

<llo_original>
// kernel: tpu_custom_call.1
$region0: #{tpu_custom_call.1}
  #allocation0 [shape = 'u32[]', space=smem, size = 0x4, offset = 0x4, fixed_abs, tag = 'smem constant byte address 0x4 - core index']
  #allocation1 [shape = 'u32[72,128]{1,0:T(1,128)}', space=vmem, size = 0x9000, scoped, tag = 'internal scratch']
  %s0 = inlined_call_operand.vmem [shape: bf16[2,8,32], index: 0, kind: input, shape index: {}]
  %s1 = inlined_call_operand.vmem [shape: bf16[2,8,32], index: 1, kind: input, shape index: {}]
  %s2 = inlined_call_operand.vmem [shape: bf16[4,32,8], index: 2, kind: input, shape index: {}]
  %s3 = inlined_call_operand.vmem [shape: f32[4,1,8], index: 3, kind: input, shape index: {}]
  %s4 = inlined_call_operand.vmem [shape: bf16[4,32,16], index: 4, kind: input, shape index: {}]
  %s5 = inlined_call_operand.vmem [shape: f32[4,1,16], index: 5, kind: input, shape index: {}]
  %s6 = inlined_call_operand.vmem [shape: bf16[4,8,32], index: 6, kind: input, shape index: {}]
  %s7 = inlined_call_operand.vmem [shape: f32[1,32], index: 7, kind: input, shape index: {}]
  %s8 = inlined_call_operand.hbm [shape: f32[2,8,32], index: 8, kind: output, shape index: {}]
  %s9 = sld [smem:[#allocation0]]
  $region69: #{tpu_custom_call.1} parent=0
    _
  %s11 = ssub.s32 1, %s9
  %s12 = scalar_select 0, %s11, %s9
  $region1: #{tpu_custom_call.1} parent=0
    #allocation2 [shape = 'u8[8192]{0}', space=vmem, size = 0x2000, scoped, tag = 'output window, operand 0']
    #allocation3 [shape = 's32[2]{0}', space=sflag, size = 0x8, scoped, tag = 'scoped memory for tpu_custom_call.1']
    %13 = vsyncpa [#allocation3], 0
    %s14 = scalar_lea.sflag [#allocation3], 1
    %15 = vsyncpa %s14, 0
    loop: start=0, step=1, limit=10
    $region2: #{tpu_custom_call.1} parent=1 // loop_pre_header
      _
    $region3: #{tpu_custom_call.1} parent=1 // loop_header
      %s17 = sphi 0, %s21
      %p18 = scmp.ge.s32.totalorder %s17, 10
      %s24 = sphi 0, %s43
      %s25 = sphi 0, %s39
      %s26 = sphi 0, %s35
      %s27 = sphi 0, %s24
      %s28 = sphi 0, %s25
      %s29 = sphi 0, %s26
      %s30 = sphi 0, %s27
      %s31 = sphi 0, %s28
      %s32 = sphi 0, %s29
      %s48 = sphi 0, %s50
      %s51 = sphi 0, %s48
      %s52 = sphi 0, %s51
      %s68 = sphi 0, %s52
      %s74 = sphi 0, %s76
      %s77 = sphi 0, %s74
      %s78 = sphi 0, %s77
      %s94 = sphi 0, %s78
      %s100 = sphi 0, %s102
      %s103 = sphi 0, %s100
      %s104 = sphi 0, %s103
      %s120 = sphi 0, %s104
      %s126 = sphi 0, %s128
      %s129 = sphi 0, %s126
      %s130 = sphi 0, %s129
      %s146 = sphi 0, %s130
      %s152 = sphi 0, %s154
      %s155 = sphi 0, %s152
      %s156 = sphi 0, %s155
      %s172 = sphi 0, %s156
      %s178 = sphi 0, %s180
      %s181 = sphi 0, %s178
      %s182 = sphi 0, %s181
      %s198 = sphi 0, %s182
      %s204 = sphi 0, %s206
      %s207 = sphi 0, %s204
      %s208 = sphi 0, %s207
      %s224 = sphi 0, %s208
      %s228 = sphi 0, %s228
      %s230 = sphi 0, %s228
      %s231 = sphi 0, %s230
      %s245 = sphi 0, %s231
      %s253 = sphi 0, %s255
      %s256 = sphi 0, %s253
      %s257 = sphi 0, %s256
      %s273 = sphi 0, %s257
    $region4: #{tpu_custom_call.1} parent=1 // loop_header_branch
      %20 = sbr.rel (%p18) target = $region8
    $region5: #{tpu_custom_call.1} parent=1 // loop_body
      %s22 = ssub.s32 %s17, 1
      %s23 = ssub.s32 %s17, 2
      %s33 = sadd.s32 1, %s26
      %p34 = scmp.ge.s32.totalorder %s33, 4
      %s35 = scalar_select %p34, 0, %s33
      %s36 = sadd.s32 1, %s25
      %s37 = scalar_select %p34, %s36, %s25
      %p38 = scmp.ge.s32.totalorder %s37, 1
      %s39 = scalar_select %p38, 0, %s37
      %s40 = sadd.s32 1, %s24
      %s41 = scalar_select %p38, %s40, %s24
      %p42 = scmp.ge.s32.totalorder %s41, 2
      %s43 = scalar_select %p42, 0, %s41
      %s44 = ssub.s32 %s24, %s43
      %s45 = ssub.s32 %s25, %s39
      %s46 = sor.u32 %s44, %s45
      %p47 = scmp.eq.s32.totalorder %s46, 0
      %s49 = sadd.s32 %s48, 1
      %s50 = scalar_select %p47, %s48, %s49
      %p53 = pneg %p47
      %p54 = scmp.eq.s32.totalorder %s17, 7
      %p55 = por %p53, %p54
      %p56 = scmp.ne.s32.totalorder %s48, %s51
      %p57 = scmp.eq.s32.totalorder %s17, 0
      %p58 = por %p56, %p57
      %p59 = scmp.ne.s32.totalorder %s48, %s51
      %p60 = scmp.eq.s32.totalorder %s22, 7
      %p61 = por %p59, %p60
      %p62 = scmp.ne.s32.totalorder %s51, %s52
      %p63 = scmp.eq.s32.totalorder %s22, 0
      %p64 = por %p62, %p63
      %p65 = scmp.ne.s32.totalorder %s51, %s52
      %p66 = scmp.eq.s32.totalorder %s23, 7
      %p67 = por %p65, %p66
      %p69 = scmp.ne.s32.totalorder %s52, %s68
      %p70 = scmp.eq.s32.totalorder %s23, 0
      %p71 = por %p69, %p70
      %s72 = ssub.s32 %s24, %s43
      %p73 = scmp.eq.s32.totalorder %s72, 0
      %s75 = sadd.s32 %s74, 1
      %s76 = scalar_select %p73, %s74, %s75
      %p79 = pneg %p73
      %p80 = scmp.eq.s32.totalorder %s17, 7
      %p81 = por %p79, %p80
      %p82 = scmp.ne.s32.totalorder %s74, %s77
      %p83 = scmp.eq.s32.totalorder %s17, 0
      %p84 = por %p82, %p83
      %p85 = scmp.ne.s32.totalorder %s74, %s77
      %p86 = scmp.eq.s32.totalorder %s22, 7
      %p87 = por %p85, %p86
      %p88 = scmp.ne.s32.totalorder %s77, %s78
      %p89 = scmp.eq.s32.totalorder %s22, 0
      %p90 = por %p88, %p89
      %p91 = scmp.ne.s32.totalorder %s77, %s78
      %p92 = scmp.eq.s32.totalorder %s23, 7
      %p93 = por %p91, %p92
      %p95 = scmp.ne.s32.totalorder %s78, %s94
      %p96 = scmp.eq.s32.totalorder %s23, 0
      %p97 = por %p95, %p96
      %s98 = ssub.s32 %s26, %s35
      %p99 = scmp.eq.s32.totalorder %s98, 0
      %s101 = sadd.s32 %s100, 1
      %s102 = scalar_select %p99, %s100, %s101
      %p105 = pneg %p99
      %p106 = scmp.eq.s32.totalorder %s17, 7
      %p107 = por %p105, %p106
      %p108 = scmp.ne.s32.totalorder %s100, %s103
      %p109 = scmp.eq.s32.totalorder %s17, 0
      %p110 = por %p108, %p109
      %p111 = scmp.ne.s32.totalorder %s100, %s103
      %p112 = scmp.eq.s32.totalorder %s22, 7
      %p113 = por %p111, %p112
      %p114 = scmp.ne.s32.totalorder %s103, %s104
      %p115 = scmp.eq.s32.totalorder %s22, 0
      %p116 = por %p114, %p115
      %p117 = scmp.ne.s32.totalorder %s103, %s104
      %p118 = scmp.eq.s32.totalorder %s23, 7
      %p119 = por %p117, %p118
      %p121 = scmp.ne.s32.totalorder %s104, %s120
      %p122 = scmp.eq.s32.totalorder %s23, 0
      %p123 = por %p121, %p122
      %s124 = ssub.s32 %s26, %s35
      %p125 = scmp.eq.s32.totalorder %s124, 0
      %s127 = sadd.s32 %s126, 1
      %s128 = scalar_select %p125, %s126, %s127
      %p131 = pneg %p125
      %p132 = scmp.eq.s32.totalorder %s17, 7
      %p133 = por %p131, %p132
      %p134 = scmp.ne.s32.totalorder %s126, %s129
      %p135 = scmp.eq.s32.totalorder %s17, 0
      %p136 = por %p134, %p135
      %p137 = scmp.ne.s32.totalorder %s126, %s129
      %p138 = scmp.eq.s32.totalorder %s22, 7
      %p139 = por %p137, %p138
      %p140 = scmp.ne.s32.totalorder %s129, %s130
      %p141 = scmp.eq.s32.totalorder %s22, 0
      %p142 = por %p140, %p141
      %p143 = scmp.ne.s32.totalorder %s129, %s130
      %p144 = scmp.eq.s32.totalorder %s23, 7
      %p145 = por %p143, %p144
      %p147 = scmp.ne.s32.totalorder %s130, %s146
      %p148 = scmp.eq.s32.totalorder %s23, 0
      %p149 = por %p147, %p148
      %s150 = ssub.s32 %s26, %s35
      %p151 = scmp.eq.s32.totalorder %s150, 0
      %s153 = sadd.s32 %s152, 1
      %s154 = scalar_select %p151, %s152, %s153
      %p157 = pneg %p151
      %p158 = scmp.eq.s32.totalorder %s17, 7
      %p159 = por %p157, %p158
      %p160 = scmp.ne.s32.totalorder %s152, %s155
      %p161 = scmp.eq.s32.totalorder %s17, 0
      %p162 = por %p160, %p161
      %p163 = scmp.ne.s32.totalorder %s152, %s155
      %p164 = scmp.eq.s32.totalorder %s22, 7
      %p165 = por %p163, %p164
      %p166 = scmp.ne.s32.totalorder %s155, %s156
      %p167 = scmp.eq.s32.totalorder %s22, 0
      %p168 = por %p166, %p167
      %p169 = scmp.ne.s32.totalorder %s155, %s156
      %p170 = scmp.eq.s32.totalorder %s23, 7
      %p171 = por %p169, %p170
      %p173 = scmp.ne.s32.totalorder %s156, %s172
      %p174 = scmp.eq.s32.totalorder %s23, 0
      %p175 = por %p173, %p174
      %s176 = ssub.s32 %s26, %s35
      %p177 = scmp.eq.s32.totalorder %s176, 0
      %s179 = sadd.s32 %s178, 1
      %s180 = scalar_select %p177, %s178, %s179
      %p183 = pneg %p177
      %p184 = scmp.eq.s32.totalorder %s17, 7
      %p185 = por %p183, %p184
      %p186 = scmp.ne.s32.totalorder %s178, %s181
      %p187 = scmp.eq.s32.totalorder %s17, 0
      %p188 = por %p186, %p187
      %p189 = scmp.ne.s32.totalorder %s178, %s181
      %p190 = scmp.eq.s32.totalorder %s22, 7
      %p191 = por %p189, %p190
      %p192 = scmp.ne.s32.totalorder %s181, %s182
      %p193 = scmp.eq.s32.totalorder %s22, 0
      %p194 = por %p192, %p193
      %p195 = scmp.ne.s32.totalorder %s181, %s182
      %p196 = scmp.eq.s32.totalorder %s23, 7
      %p197 = por %p195, %p196
      %p199 = scmp.ne.s32.totalorder %s182, %s198
      %p200 = scmp.eq.s32.totalorder %s23, 0
      %p201 = por %p199, %p200
      %s202 = ssub.s32 %s26, %s35
      %p203 = scmp.eq.s32.totalorder %s202, 0
      %s205 = sadd.s32 %s204, 1
      %s206 = scalar_select %p203, %s204, %s205
      %p209 = pneg %p203
      %p210 = scmp.eq.s32.totalorder %s17, 7
      %p211 = por %p209, %p210
      %p212 = scmp.ne.s32.totalorder %s204, %s207
      %p213 = scmp.eq.s32.totalorder %s17, 0
      %p214 = por %p212, %p213
      %p215 = scmp.ne.s32.totalorder %s204, %s207
      %p216 = scmp.eq.s32.totalorder %s22, 7
      %p217 = por %p215, %p216
      %p218 = scmp.ne.s32.totalorder %s207, %s208
      %p219 = scmp.eq.s32.totalorder %s22, 0
      %p220 = por %p218, %p219
      %p221 = scmp.ne.s32.totalorder %s207, %s208
      %p222 = scmp.eq.s32.totalorder %s23, 7
      %p223 = por %p221, %p222
      %p225 = scmp.ne.s32.totalorder %s208, %s224
      %p226 = scmp.eq.s32.totalorder %s23, 0
      %p227 = por %p225, %p226
      %s229 = sadd.s32 %s228, 1
      %p232 = scmp.eq.s32.totalorder %s17, 7
      %p233 = scmp.ne.s32.totalorder %s228, %s230
      %p234 = scmp.eq.s32.totalorder %s17, 0
      %p235 = por %p233, %p234
      %p236 = scmp.ne.s32.totalorder %s228, %s230
      %p237 = scmp.eq.s32.totalorder %s22, 7
      %p238 = por %p236, %p237
      %p239 = scmp.ne.s32.totalorder %s230, %s231
      %p240 = scmp.eq.s32.totalorder %s22, 0
      %p241 = por %p239, %p240
      %p242 = scmp.ne.s32.totalorder %s230, %s231
      %p243 = scmp.eq.s32.totalorder %s23, 7
      %p244 = por %p242, %p243
      %p246 = scmp.ne.s32.totalorder %s231, %s245
      %p247 = scmp.eq.s32.totalorder %s23, 0
      %p248 = por %p246, %p247
      %s249 = ssub.s32 %s24, %s43
      %s250 = ssub.s32 %s25, %s39
      %s251 = sor.u32 %s249, %s250
      %p252 = scmp.eq.s32.totalorder %s251, 0
      %s254 = sadd.s32 %s253, 1
      %s255 = scalar_select %p252, %s253, %s254
      %p258 = pneg %p252
      %p259 = scmp.eq.s32.totalorder %s17, 7
      %p260 = por %p258, %p259
      %p261 = scmp.ne.s32.totalorder %s253, %s256
      %p262 = scmp.eq.s32.totalorder %s17, 0
      %p263 = por %p261, %p262
      %p264 = scmp.ne.s32.totalorder %s253, %s256
      %p265 = scmp.eq.s32.totalorder %s22, 7
      %p266 = por %p264, %p265
      %p267 = scmp.ne.s32.totalorder %s256, %s257
      %p268 = scmp.eq.s32.totalorder %s22, 0
      %p269 = por %p267, %p268
      %p270 = scmp.ne.s32.totalorder %s256, %s257
      %p271 = scmp.eq.s32.totalorder %s23, 7
      %p272 = por %p270, %p271
      %p274 = scmp.ne.s32.totalorder %s257, %s273
      %p275 = scmp.eq.s32.totalorder %s23, 0
      %p276 = por %p274, %p275
      %p277 = scmp.le.s32.totalorder 1, %s17
      %p278 = scmp.lt.s32.totalorder %s17, 9
      %p279 = pnand %p277, %p278
      %p280 = pneg %p279
      // Predicated region
      $region9: #{tpu_custom_call.1} parent=5 // pred_check
        _
      $region10: #{tpu_custom_call.1} parent=5 // pred_check_branch
        %282 = sbr.rel (%p279) target = $region12
      $region11: #{tpu_custom_call.1} parent=5 // pred_region
        %s283 = ssub.s32 %s17, 1
        // Predicated region
        $region13: #{tpu_custom_call.1} parent=11 // pred_check
          %p284 = pneg %p241
        $region14: #{tpu_custom_call.1} parent=11 // pred_check_branch
          %286 = sbr.rel (%p284) target = $region16
        $region15: #{tpu_custom_call.1} parent=11 // pred_region
          _
        $region16: #{tpu_custom_call.1} parent=11 // pred_fallthru
          _
      $region12: #{tpu_custom_call.1} parent=5 // pred_fallthru
        _
      %p287 = scmp.lt.s32.totalorder %s17, 8
      // Predicated region
      $region17: #{tpu_custom_call.1} parent=5 // pred_check
        %p288 = pneg %p287
      $region18: #{tpu_custom_call.1} parent=5 // pred_check_branch
        %290 = sbr.rel (%p288) target = $region20
      $region19: #{tpu_custom_call.1} parent=5 // pred_region
        // Predicated region
        $region21: #{tpu_custom_call.1} parent=19 // pred_check
          %p291 = pneg %p58
        $region22: #{tpu_custom_call.1} parent=19 // pred_check_branch
          %293 = sbr.rel (%p291) target = $region24
        $region23: #{tpu_custom_call.1} parent=19 // pred_region
          %p294 = scmp.lt.s32.totalorder %s24, 1
          %s295 = scalar_select %p294, %s24, 1
          %p296 = scmp.lt.s32.totalorder %s25, 0
          %s297 = scalar_select %p296, %s25, 0
          %s298 = sadd.s32 %s297, %s295
          %s299 = smul.addr %s298, 4
          %s300 = scalar_lea.vmem %s0, %s299
        $region24: #{tpu_custom_call.1} parent=19 // pred_fallthru
          _
        // Predicated region
        $region25: #{tpu_custom_call.1} parent=19 // pred_check
          %p301 = pneg %p84
        $region26: #{tpu_custom_call.1} parent=19 // pred_check_branch
          %303 = sbr.rel (%p301) target = $region28
        $region27: #{tpu_custom_call.1} parent=19 // pred_region
          %p304 = scmp.lt.s32.totalorder %s24, 1
          %s305 = scalar_select %p304, %s24, 1
          %s306 = smul.addr %s305, 4
          %s307 = scalar_lea.vmem %s1, %s306
        $region28: #{tpu_custom_call.1} parent=19 // pred_fallthru
          _
        // Predicated region
        $region29: #{tpu_custom_call.1} parent=19 // pred_check
          %p308 = pneg %p110
        $region30: #{tpu_custom_call.1} parent=19 // pred_check_branch
          %310 = sbr.rel (%p308) target = $region32
        $region31: #{tpu_custom_call.1} parent=19 // pred_region
          %p311 = scmp.lt.s32.totalorder %s26, 3
          %s312 = scalar_select %p311, %s26, 3
          %s313 = smul.addr %s312, 4
          %s314 = smul.addr %s313, 4
          %s315 = scalar_lea.vmem %s2, %s314
        $region32: #{tpu_custom_call.1} parent=19 // pred_fallthru
          _
        // Predicated region
        $region33: #{tpu_custom_call.1} parent=19 // pred_check
          %p316 = pneg %p136
        $region34: #{tpu_custom_call.1} parent=19 // pred_check_branch
          %318 = sbr.rel (%p316) target = $region36
        $region35: #{tpu_custom_call.1} parent=19 // pred_region
          %p319 = scmp.lt.s32.totalorder %s26, 3
          %s320 = scalar_select %p319, %s26, 3
          %s321 = scalar_lea.vmem %s3, %s320
        $region36: #{tpu_custom_call.1} parent=19 // pred_fallthru
          _
        // Predicated region
        $region37: #{tpu_custom_call.1} parent=19 // pred_check
          %p322 = pneg %p162
        $region38: #{tpu_custom_call.1} parent=19 // pred_check_branch
          %324 = sbr.rel (%p322) target = $region40
        $region39: #{tpu_custom_call.1} parent=19 // pred_region
          %p325 = scmp.lt.s32.totalorder %s26, 3
          %s326 = scalar_select %p325, %s26, 3
          %s327 = smul.addr %s326, 4
          %s328 = smul.addr %s327, 4
          %s329 = scalar_lea.vmem %s4, %s328
        $region40: #{tpu_custom_call.1} parent=19 // pred_fallthru
          _
        // Predicated region
        $region41: #{tpu_custom_call.1} parent=19 // pred_check
          %p330 = pneg %p188
        $region42: #{tpu_custom_call.1} parent=19 // pred_check_branch
          %332 = sbr.rel (%p330) target = $region44
        $region43: #{tpu_custom_call.1} parent=19 // pred_region
          %p333 = scmp.lt.s32.totalorder %s26, 3
          %s334 = scalar_select %p333, %s26, 3
          %s335 = scalar_lea.vmem %s5, %s334
        $region44: #{tpu_custom_call.1} parent=19 // pred_fallthru
          _
        // Predicated region
        $region45: #{tpu_custom_call.1} parent=19 // pred_check
          %p336 = pneg %p214
        $region46: #{tpu_custom_call.1} parent=19 // pred_check_branch
          %338 = sbr.rel (%p336) target = $region48
        $region47: #{tpu_custom_call.1} parent=19 // pred_region
          %p339 = scmp.lt.s32.totalorder %s26, 3
          %s340 = scalar_select %p339, %s26, 3
          %s341 = smul.addr %s340, 4
          %s342 = scalar_lea.vmem %s6, %s341
        $region48: #{tpu_custom_call.1} parent=19 // pred_fallthru
          _
      $region20: #{tpu_custom_call.1} parent=5 // pred_fallthru
        _
      %p343 = scmp.le.s32.totalorder 1, %s17
      %p344 = scmp.lt.s32.totalorder %s17, 9
      %p345 = pnand %p343, %p344
      %p346 = pneg %p345
      // Predicated region
      $region49: #{tpu_custom_call.1} parent=5 // pred_check
        _
      $region50: #{tpu_custom_call.1} parent=5 // pred_check_branch
        %348 = sbr.rel (%p345) target = $region52
      $region51: #{tpu_custom_call.1} parent=5 // pred_region
        %s349 = ssub.s32 %s17, 1
        %p350 = scmp.lt.s32.totalorder %s27, 1
        %s351 = scalar_select %p350, %s27, 1
        %p352 = scmp.lt.s32.totalorder %s28, 0
        %s353 = scalar_select %p352, %s28, 0
        %s354 = sadd.s32 %s353, %s351
        %s355 = smul.addr %s354, 4
        %s356 = scalar_lea.vmem %s0, %s355
        %p357 = pneg %p64
        %p358 = pneg %p61
        %p359 = scmp.lt.s32.totalorder %s27, 1
        %s360 = scalar_select %p359, %s27, 1
        %s361 = smul.addr %s360, 4
        %s362 = scalar_lea.vmem %s1, %s361
        %p363 = pneg %p90
        %p364 = pneg %p87
        %p365 = scmp.lt.s32.totalorder %s29, 3
        %s366 = scalar_select %p365, %s29, 3
        %s367 = smul.addr %s366, 4
        %s368 = smul.addr %s367, 4
        %s369 = scalar_lea.vmem %s2, %s368
        %p370 = pneg %p116
        %p371 = pneg %p113
        %p372 = scmp.lt.s32.totalorder %s29, 3
        %s373 = scalar_select %p372, %s29, 3
        %s374 = scalar_lea.vmem %s3, %s373
        %p375 = pneg %p142
        %p376 = pneg %p139
        %p377 = scmp.lt.s32.totalorder %s29, 3
        %s378 = scalar_select %p377, %s29, 3
        %s379 = smul.addr %s378, 4
        %s380 = smul.addr %s379, 4
        %s381 = scalar_lea.vmem %s4, %s380
        %p382 = pneg %p168
        %p383 = pneg %p165
        %p384 = scmp.lt.s32.totalorder %s29, 3
        %s385 = scalar_select %p384, %s29, 3
        %s386 = scalar_lea.vmem %s5, %s385
        %p387 = pneg %p194
        %p388 = pneg %p191
        %p389 = scmp.lt.s32.totalorder %s29, 3
        %s390 = scalar_select %p389, %s29, 3
        %s391 = smul.addr %s390, 4
        %s392 = scalar_lea.vmem %s6, %s391
        %p393 = pneg %p220
        %p394 = pneg %p217
        %p395 = pneg %p241
        %p396 = pneg %p238
        %p397 = pneg %p269
        %p398 = pneg %p266
        %s399 = sand.u32 %s256, 1
        %s400 = scalar_lea.sflag [#allocation3], %s399
        %s401 = sand.u32 %s256, 1
        %s402 = smul.addr %s401, 8
        %s403 = scalar_lea.vmem [#allocation2], %s402
        %p404 = scmp.lt.s32.totalorder %s27, 1
        %s405 = scalar_select %p404, %s27, 1
        %p406 = scmp.lt.s32.totalorder %s28, 0
        %s407 = scalar_select %p406, %s28, 0
        %s408 = sadd.s32 %s407, %s405
        %s409 = smul.addr %s408, 4
        %s410 = scalar_lea.vmem %s0, %s409
        %p411 = scmp.lt.s32.totalorder %s27, 1
        %s412 = scalar_select %p411, %s27, 1
        %s413 = smul.addr %s412, 4
        %s414 = scalar_lea.vmem %s1, %s413
        %p415 = scmp.lt.s32.totalorder %s29, 3
        %s416 = scalar_select %p415, %s29, 3
        %s417 = smul.addr %s416, 4
        %s418 = smul.addr %s417, 4
        %s419 = scalar_lea.vmem %s2, %s418
        %p420 = scmp.lt.s32.totalorder %s29, 3
        %s421 = scalar_select %p420, %s29, 3
        %s422 = scalar_lea.vmem %s3, %s421
        %p423 = scmp.lt.s32.totalorder %s29, 3
        %s424 = scalar_select %p423, %s29, 3
        %s425 = smul.addr %s424, 4
        %s426 = smul.addr %s425, 4
        %s427 = scalar_lea.vmem %s4, %s426
        %p428 = scmp.lt.s32.totalorder %s29, 3
        %s429 = scalar_select %p428, %s29, 3
        %s430 = scalar_lea.vmem %s5, %s429
        %p431 = scmp.lt.s32.totalorder %s29, 3
        %s432 = scalar_select %p431, %s29, 3
        %s433 = smul.addr %s432, 4
        %s434 = scalar_lea.vmem %s6, %s433
        %v436 = vld [vmem:[%s410] sm:$0xf]
        %v437 = vld [vmem:[%s414] sm:$0xf]
        %v438 = vld [vmem:[%s419] sm:$0xf]
        %v439 = vld [vmem:[%s419 + $0x4] sm:$0xf]
        %v440 = vld [vmem:[%s419 + $0x8] sm:$0xf]
        %v441 = vld [vmem:[%s419 + $0xc] sm:$0xf]
        %v442 = vld [vmem:[%s422] sm:$0x1]
        %v443 = vld [vmem:[%s427] sm:$0xf]
        %v444 = vld [vmem:[%s427 + $0x4] sm:$0xf]
        %v445 = vld [vmem:[%s427 + $0x8] sm:$0xf]
        %v446 = vld [vmem:[%s427 + $0xc] sm:$0xf]
        %v447 = vld [vmem:[%s430] sm:$0x1]
        %v448 = vld [vmem:[%s434] sm:$0xf]
        %v449 = vld [vmem:[%s7] sm:$0x1]
        %v451 = vperm.slane %v442, 0
        %v457 = vunpack.c.l.b16 %v438
        %v458 = vunpack.c.l.b16 %v439
        %v459 = vunpack.c.l.b16 %v440
        %v460 = vunpack.c.l.b16 %v441
        %v461 = vpack.c.b16 %v458, %v457
        %v462 = vpack.c.b16 %v460, %v459
        %vm465 = vcmask 261120
        %v467 = vsel %vm465, %v436, 0
        %469 = vmatpush.bf16.msra.mxu0 0
        %470 = vmatpush.bf16.msra.mxu0 0
        %471 = vmatpush.bf16.msra.mxu0 0
        %472 = vmatpush.bf16.msra.mxu0 0
        %473 = vmatpush.bf16.msra.mxu0 0
        %474 = vmatpush.bf16.msra.mxu0 0
        %475 = vmatpush.bf16.msra.mxu0 %v462
        %476 = vmatpush.bf16.msra.mxu0 %v461
        %477 = vmatmul.bf16.gmra.mxu0 %v467
        %v478 = vpop.f32.mrf.mxu0
        %v479 = vadd.f32 %v451, %v478
        %v480 = vpop.f32.mrf.mxu0
        %481 = vdwg.mxu0
        %v483 = vperm.slane %v447, 0
        %v489 = vunpack.c.l.b16 %v443
        %v490 = vunpack.c.l.b16 %v444
        %v491 = vunpack.c.l.b16 %v445
        %v492 = vunpack.c.l.b16 %v446
        %v493 = vpack.c.b16 %v490, %v489
        %v494 = vpack.c.b16 %v492, %v491
        %v498 = vsel %vm465, %v437, 0
        %500 = vmatpush.bf16.msra.mxu0 0
        %501 = vmatpush.bf16.msra.mxu0 0
        %502 = vmatpush.bf16.msra.mxu0 0
        %503 = vmatpush.bf16.msra.mxu0 0
        %504 = vmatpush.bf16.msra.mxu0 0
        %505 = vmatpush.bf16.msra.mxu0 0
        %506 = vmatpush.bf16.msra.mxu0 %v494
        %507 = vmatpush.bf16.msra.mxu0 %v493
        %508 = vmatmul.bf16.gmra.mxu0 %v498
        %v509 = vpop.f32.mrf.mxu0
        %v510 = vadd.f32 %v483, %v509
        %v511 = vpop.f32.mrf.mxu0
        %512 = vdwg.mxu0
        %v513 = vpack.c.bf16 %v479, %v479
        %v514 = vpack.c.bf16 %v510, %v510
        %vm515 = vcmask 64512
        %v517 = vsel %vm515, %v513, 0
        %v520 = vsel %vm515, %v514, 0
        %522 = vmatpush.bf16.xpose.msra.mxu0 0
        %523 = vmatpush.bf16.xpose.msra.mxu0 0
        %524 = vmatpush.bf16.xpose.msra.mxu0 0
        %525 = vmatpush.bf16.xpose.msra.mxu0 0
        %526 = vmatpush.bf16.xpose.msra.mxu0 0
        %527 = vmatpush.bf16.xpose.msra.mxu0 0
        %528 = vmatpush.bf16.xpose.msra.mxu0 0
        %529 = vmatpush.bf16.xpose.msra.mxu0 %v520
        %530 = vmatmul.bf16.gmra.mxu0 %v517
        %v531 = vpop.f32.mrf.mxu0
        %v532 = vadd.f32 0.0, %v531
        %v533 = vpop.f32.mrf.mxu0
        %534 = vdwg.mxu0
        %v535 = vsel %vm515, %v532, -inf
        %536 = vmax.xlane.f32.xlu0 %v535
        %v537 = vpop.xlane.xlu0 %536
        %v538 = vsub.f32 %v532, %v537
        %v539 = vmul.f32 %v538, 1.442695
        %v540 = vpow.pop %v539
        %v541 = vsel %vm515, %v540, 0.0
        %542 = vadd.xlane.f32.xlu0 %v541
        %v543 = vpop.xlane.xlu0 %542
        %v544 = vpack.c.bf16 %v540, %v540
        %546 = vrot.lane.b32.xlu0 %v514, 120
        %v547 = vpop.permute.xlu0 %546
        %v549 = vsel %vm515, %v544, 0
        %vm551 = vcmask 1043456
        %v553 = vsel %vm551, %v547, 0
        %555 = vmatpush.bf16.msra.mxu0 0
        %556 = vmatpush.bf16.msra.mxu0 0
        %557 = vmatpush.bf16.msra.mxu0 0
        %558 = vmatpush.bf16.msra.mxu0 0
        %559 = vmatpush.bf16.msra.mxu0 0
        %560 = vmatpush.bf16.msra.mxu0 0
        %561 = vmatpush.bf16.msra.mxu0 0
        %562 = vmatpush.bf16.msra.mxu0 %v553
        %563 = vmatmul.bf16.gmra.mxu0 %v549
        %v564 = vpop.f32.mrf.mxu0
        %v565 = vadd.f32 0.0, %v564
        %v566 = vpop.f32.mrf.mxu0
        %567 = vdwg.mxu0
        %v568 = vrcp.pop %v543
        %v569 = vmul.f32 %v565, %v568
        %v570 = vpack.c.bf16 %v569, %v569
        %v572 = vsel %vm515, %v570, 0
        %v575 = vsel %vm551, %v448, 0
        %577 = vmatpush.bf16.msra.mxu0 0
        %578 = vmatpush.bf16.msra.mxu0 0
        %579 = vmatpush.bf16.msra.mxu0 0
        %580 = vmatpush.bf16.msra.mxu0 0
        %581 = vmatpush.bf16.msra.mxu0 0
        %582 = vmatpush.bf16.msra.mxu0 0
        %583 = vmatpush.bf16.msra.mxu0 0
        %584 = vmatpush.bf16.msra.mxu0 %v575
        %585 = vmatmul.bf16.gmra.mxu0 %v572
        %v586 = vpop.f32.mrf.mxu0
        %v587 = vadd.f32 0.0, %v586
        %v588 = vpop.f32.mrf.mxu0
        %589 = vdwg.mxu0
        %p590 = scmp.eq.s32.totalorder %s29, 0
        // Predicated region
        $region53: #{tpu_custom_call.1} parent=51 // pred_check
          %p591 = pneg %p590
        $region54: #{tpu_custom_call.1} parent=51 // pred_check_branch
          %593 = sbr.rel (%p591) target = $region56
        $region55: #{tpu_custom_call.1} parent=51 // pred_region
          %v595 = vperm.slane %v449, 0
          %597 = vst.msk [vmem:[%s403] sm:$0xff] %vm465, %v595
        $region56: #{tpu_custom_call.1} parent=51 // pred_fallthru
          _
        %v598 = vld [vmem:[%s403] sm:$0xff]
        %v599 = vadd.f32 %v598, %v587
        %600 = vst.msk [vmem:[%s403] sm:$0xff] %vm465, %v599
        %s601 = sand.u32 %s256, 1
        %s602 = scalar_lea.sflag [#allocation3], %s601
        %s603 = sand.u32 %s256, 1
        %s604 = smul.addr %s603, 8
        %s605 = scalar_lea.vmem [#allocation2], %s604
        // Predicated region
        $region57: #{tpu_custom_call.1} parent=51 // pred_check
          %p606 = pneg %p266
        $region58: #{tpu_custom_call.1} parent=51 // pred_check_branch
          %608 = sbr.rel (%p606) target = $region60
        $region59: #{tpu_custom_call.1} parent=51 // pred_region
          %610 = vsyncadd %s602, 0
          %s611 = sadd.s32 %s28, %s27
          %s612 = smul.addr %s611, 8
          %s613 = scalar_lea.hbm %s8, %s612
          %s615 = sshll.u32 %s605, 4
          %s616 = int_to_ptr.vmem [resolvable:$true] %s615
          %s617 = sshll.u32 %s613, 4
          %s618 = int_to_ptr.hbm [resolvable:$true] %s617
          %620 = dma.vmem_to_hbm [thread:$0]  %s616, 128, %s618, %s602
        $region60: #{tpu_custom_call.1} parent=51 // pred_fallthru
          _
      $region52: #{tpu_custom_call.1} parent=5 // pred_fallthru
        _
      %p621 = scmp.le.s32.totalorder 2, %s17
      // Predicated region
      $region61: #{tpu_custom_call.1} parent=5 // pred_check
        %p622 = pneg %p621
      $region62: #{tpu_custom_call.1} parent=5 // pred_check_branch
        %624 = sbr.rel (%p622) target = $region64
      $region63: #{tpu_custom_call.1} parent=5 // pred_region
        %s625 = ssub.s32 %s17, 2
        // Predicated region
        $region65: #{tpu_custom_call.1} parent=63 // pred_check
          %p626 = pneg %p272
        $region66: #{tpu_custom_call.1} parent=63 // pred_check_branch
          %628 = sbr.rel (%p626) target = $region68
        $region67: #{tpu_custom_call.1} parent=63 // pred_region
          %s629 = sand.u32 %s257, 1
          %s630 = scalar_lea.sflag [#allocation3], %s629
          %s631 = sand.u32 %s257, 1
          %s632 = smul.addr %s631, 8
          %s633 = scalar_lea.vmem [#allocation2], %s632
          %635 = dma.done %s630, 128
        $region68: #{tpu_custom_call.1} parent=63 // pred_fallthru
          _
      $region64: #{tpu_custom_call.1} parent=5 // pred_fallthru
        _
    $region6: #{tpu_custom_call.1} parent=1 // loop_footer
      %s21 = sadd.s32 1, %s17
    $region7: #{tpu_custom_call.1} parent=1 // loop_footer_branch
      %16 = sbr.rel target = $region3
    $region8: #{tpu_custom_call.1} parent=1 // loop_exit
      _
    %636 = vsyncpa [#allocation3], 1
    %s637 = scalar_lea.sflag [#allocation3], 1
    %638 = vsyncpa %s637, 1

</llo_original>
